<compile_context>
chip_gen: v5e
topology: v5e:2x2
jax: 0.10.0
libtpu: 0.0.40
codegen_flags: <defaults>
</compile_context>

<pallas_src>
import jax
import jax.numpy as jnp
from jax.experimental import pallas as pl
from jax.experimental.pallas import tpu as pltpu

_LANES = 128           # lane-dense last dim
_MAX_TILE_ROWS = 4096  # 4096*128*4 B = 2 MiB/buffer; in+out double-buffered
                       # = 8 MiB VMEM -> safe on v5e (16 MiB scoped default),
                       # v6e and v7x (32 MiB scoped default).


def _round_up(n, m):
    return ((n + m - 1) // m) * m


def actor_loss_kernel(params_ref, x_ref, out_ref):
    # params_ref : SMEM f32[6] = [W1[0,0], W1[1,0], W2[0,0], W2[0,1], W2[0,2], W2[0,3]]
    # x_ref      : VMEM f32[TILE_R, 128]   (one scalar input per element)
    # out_ref    : VMEM     [TILE_R, 128]  (one scalar output per element)
    x = x_ref[...]

    w1_0 = params_ref[0]
    w1_1 = params_ref[1]
    w2_0 = params_ref[2]
    w2_1 = params_ref[3]
    w2_2 = params_ref[4]
    w2_3 = params_ref[5]

    # Actor: 2-class softmax via the sigmoid identity.
    #   l0 = x*w1_0, l1 = x*w1_1 ; y1 = 1/(1+exp(l0-l1)) ; y0 = 1-y1
    # Clamp the logit gap so exp never overflows to inf (y1 underflows to ~0,
    # matching the overflow-safe reference softmax limit).
    d = jnp.minimum(x * (w1_0 - w1_1), 80.0)
    y1 = pl.reciprocal(1.0 + jnp.exp(d), approx=False)   # exact; DMA-bound anyway
    y0 = 1.0 - y1

    # Critic on cat(y, one_hot): the one-hot term just selects a W2 column,
    # so everything stays elementwise on the VPU (no MXU for K<=4).
    base = y0 * w2_0 + y1 * w2_1
    out_ref[...] = ((base + w2_2) * y0 + (base + w2_3) * y1).astype(out_ref.dtype)


def _actor_loss_impl(x, w1, w2, out_dtype=jnp.float32):
    """x: [B, 1] (or [B]), w1: [2, 1] Actor weight, w2: [1, 4] Critic weight."""
    xf = jnp.ravel(x).astype(jnp.float32)
    batch = xf.shape[0]

    # Lane-dense slab: pad only to the next multiple of 128. When batch is
    # already a multiple of 128 (the common large-batch case) the reshape is a
    # free bitcast and there is no extra HBM pass at all.
    batch_p = _round_up(batch, _LANES)
    if batch_p != batch:
        xf = jnp.pad(xf, (0, batch_p - batch))
    rows = batch_p // _LANES
    x2d = xf.reshape(rows, _LANES)

    # Tile selection: sublane-aligned, VMEM-capped, and >= 2 grid steps when
    # rows allow so the "parallel" axis feeds both v7x TensorCores and the
    # pipeline has something to overlap. The ragged last block (if any) is
    # masked by Pallas: OOB reads are dropped lanes, OOB writes are skipped.
    sub = 8 if jnp.dtype(out_dtype).itemsize == 4 else 16
    if rows <= sub:
        tile_rows = rows                      # single block == full extent
    else:
        tile_rows = min(_MAX_TILE_ROWS, _round_up(pl.cdiv(rows, 2), sub))
    n_tiles = pl.cdiv(rows, tile_rows)

    # Pack all six scalar parameters into one array; lands in SMEM via scalar
    # prefetch (one tiny transfer instead of several sub-tile VMEM DMAs).
    params = jnp.concatenate(
        [jnp.ravel(w1), jnp.ravel(w2)]).astype(jnp.float32)  # f32[6]

    n_elems = rows * _LANES
    out_bytes = jnp.dtype(out_dtype).itemsize
    out2d = pl.pallas_call(
        actor_loss_kernel,
        out_shape=jax.ShapeDtypeStruct((rows, _LANES), out_dtype),
        grid_spec=pltpu.PrefetchScalarGridSpec(
            num_scalar_prefetch=1,
            grid=(n_tiles,),
            in_specs=[pl.BlockSpec((tile_rows, _LANES), lambda i, p: (i, 0))],
            out_specs=pl.BlockSpec((tile_rows, _LANES), lambda i, p: (i, 0)),
        ),
        compiler_params=pltpu.CompilerParams(
            dimension_semantics=("parallel",)),
        cost_estimate=pl.CostEstimate(
            flops=12 * n_elems,
            transcendentals=n_elems,
            bytes_accessed=(4 + out_bytes) * n_elems + 24),
    )(params, x2d)

    out_flat = out2d.reshape(-1)
    if batch_p != batch:
        out_flat = out_flat[:batch]           # only pays when batch % 128 != 0
    return out_flat.reshape(batch, 1)


# jit the wrapper so any reshape/pad/param-packing fuses into one dispatch.
actor_loss = jax.jit(_actor_loss_impl, static_argnames=("out_dtype",))


def actor_loss_ref(x, w1, w2):
    """Pure-JAX reference mirroring the PyTorch forward (row-wise)."""
    b = x.shape[0]
    y = jax.nn.softmax(x @ w1.T, axis=-1)                                  # [B, 2]
    e0 = jnp.broadcast_to(jnp.array([[1.0, 0.0]], jnp.float32), (b, 2))
    e1 = jnp.broadcast_to(jnp.array([[0.0, 1.0]], jnp.float32), (b, 2))
    y0 = jnp.concatenate([y, e0], axis=1) @ w2.T                           # [B, 1]
    y1 = jnp.concatenate([y, e1], axis=1) @ w2.T                           # [B, 1]
    return y0 * y[:, 0:1] + y1 * y[:, 1:2]                                 # [B, 1]


if __name__ == "__main__":
    key = jax.random.PRNGKey(0)
    kx, k1, k2 = jax.random.split(key, 3)

    # Deterministic synthetic parameters (shapes from the nn.Module __init__).
    w1 = jax.random.normal(k1, (2, 1), dtype=jnp.float32) * 0.5   # Actor.affine1.weight
    w2 = jax.random.normal(k2, (1, 4), dtype=jnp.float32) * 0.5   # Critic.affine1.weight

    # Batch sizes exercising: tiny single-tile path, the original [1,1] case,
    # the padded (batch % 128 != 0) path, and a ragged multi-tile grid
    # (rows=10, tile=8, 2 grid steps -> masked last block).
    for B in (64, 1, 200, 1280):
        x = jax.random.normal(kx, (B, 1), dtype=jnp.float32)      # actor input
        out = actor_loss(x, w1, w2)
        jax.block_until_ready(out)
        ref = actor_loss_ref(x, w1, w2)
        assert out.shape == (B, 1), (B, out.shape)
        assert jnp.allclose(out, ref, atol=1e-5, rtol=1e-4), (B, out, ref)

    print("KERNEL_OK")
</pallas_src>

<mosaic_0001>
module attributes {stable_mosaic.version = 11 : i64} {
  func.func @actor_loss_kernel(%arg0: i32, %arg1: memref<6xf32, #tpu.memory_space<smem>>, %arg2: memref<1x128xf32, #tpu.memory_space<vmem>>, %arg3: memref<1x128xf32, #tpu.memory_space<vmem>>) attributes {dimension_semantics = [#tpu.dimension_semantics<parallel>], iteration_bounds = array<i64: 1>, scalar_prefetch = 1 : i64, scratch_operands = 0 : i64, tpu.core_type = #tpu.core_type<tc>, window_params = [{transform_indices = @transform_0, window_bounds = array<i64: 1, 128>}, {transform_indices = @transform_1, window_bounds = array<i64: 1, 128>}]} {
    %c0 = arith.constant 0 : index
    %c0_0 = arith.constant 0 : index
    %0 = vector.load %arg2[%c0, %c0_0] : memref<1x128xf32, #tpu.memory_space<vmem>>, vector<1x128xf32>
    %c0_1 = arith.constant 0 : index
    %1 = memref.load %arg1[%c0_1] : memref<6xf32, #tpu.memory_space<smem>>
    %c1 = arith.constant 1 : index
    %2 = memref.load %arg1[%c1] : memref<6xf32, #tpu.memory_space<smem>>
    %c2 = arith.constant 2 : index
    %3 = memref.load %arg1[%c2] : memref<6xf32, #tpu.memory_space<smem>>
    %c3 = arith.constant 3 : index
    %4 = memref.load %arg1[%c3] : memref<6xf32, #tpu.memory_space<smem>>
    %c4 = arith.constant 4 : index
    %5 = memref.load %arg1[%c4] : memref<6xf32, #tpu.memory_space<smem>>
    %c5 = arith.constant 5 : index
    %6 = memref.load %arg1[%c5] : memref<6xf32, #tpu.memory_space<smem>>
    %7 = arith.subf %1, %2 : f32
    %8 = vector.broadcast %7 : f32 to vector<1x128xf32>
    %9 = arith.mulf %0, %8 : vector<1x128xf32>
    %cst = arith.constant 8.000000e+01 : f32
    %10 = vector.broadcast %cst : f32 to vector<1x128xf32>
    %11 = arith.minimumf %9, %10 : vector<1x128xf32>
    %12 = math.exp %11 : vector<1x128xf32>
    %cst_2 = arith.constant 1.000000e+00 : f32
    %13 = vector.broadcast %cst_2 : f32 to vector<1x128xf32>
    %14 = arith.addf %13, %12 : vector<1x128xf32>
    %15 = tpu.reciprocal %14 : vector<1x128xf32> -> vector<1x128xf32>
    %cst_3 = arith.constant 1.000000e+00 : f32
    %16 = vector.broadcast %cst_3 : f32 to vector<1x128xf32>
    %17 = arith.subf %16, %15 : vector<1x128xf32>
    %18 = vector.broadcast %3 : f32 to vector<1x128xf32>
    %19 = arith.mulf %17, %18 : vector<1x128xf32>
    %20 = vector.broadcast %4 : f32 to vector<1x128xf32>
    %21 = arith.mulf %15, %20 : vector<1x128xf32>
    %22 = arith.addf %19, %21 : vector<1x128xf32>
    %23 = vector.broadcast %5 : f32 to vector<1x128xf32>
    %24 = arith.addf %22, %23 : vector<1x128xf32>
    %25 = arith.mulf %24, %17 : vector<1x128xf32>
    %26 = vector.broadcast %6 : f32 to vector<1x128xf32>
    %27 = arith.addf %22, %26 : vector<1x128xf32>
    %28 = arith.mulf %27, %15 : vector<1x128xf32>
    %29 = arith.addf %25, %28 : vector<1x128xf32>
    %c0_4 = arith.constant 0 : index
    %c0_5 = arith.constant 0 : index
    %30 = vector.load %arg3[%c0_4, %c0_5] : memref<1x128xf32, #tpu.memory_space<vmem>>, vector<1x128xf32>
    tpu.vector_store %arg3[%c0_4, %c0_5], %29 {strides = array<i32>} : memref<1x128xf32, #tpu.memory_space<vmem>>, vector<1x128xf32>,
    return
  }
  func.func @transform_0(%arg0: i32, %arg1: memref<6xf32, #tpu.memory_space<smem>>) -> (i32, i32) {
    %c0_i32 = arith.constant 0 : i32
    %c0_i32_0 = arith.constant 0 : i32
    return %arg0, %c0_i32 : i32, i32
  }
  func.func @transform_1(%arg0: i32, %arg1: memref<6xf32, #tpu.memory_space<smem>>) -> (i32, i32) {
    %c0_i32 = arith.constant 0 : i32
    %c0_i32_0 = arith.constant 0 : i32
    return %arg0, %c0_i32 : i32, i32
  }
}

</mosaic_0001>

<llo_original>
// kernel: _actor_loss_impl.1
$region0: #{_actor_loss_impl.1}
  #allocation0 [shape = 'u32[]', space=smem, size = 0x4, offset = 0x4, fixed_abs, tag = 'smem constant byte address 0x4 - core index']
  #allocation1 [shape = 'u32[72,128]{1,0:T(1,128)}', space=vmem, size = 0x9000, scoped, tag = 'internal scratch']
  #allocation2 [shape = 's32[1]{0}', space=sflag, size = 0x4, scoped, tag = 'scoped memory for _actor_loss_impl.1']
  #allocation3 [shape = 'u8[512]{0}', space=smem, size = 0x200, scoped, tag = 'prefetched SMEM operand 0']
  %s0 = inlined_call_operand.vmem [shape: f32[6], index: 0, kind: input, shape index: {}]
  %s1 = inlined_call_operand.vmem [shape: f32[1,128], index: 1, kind: input, shape index: {}]
  %s2 = inlined_call_operand.vmem [shape: f32[1,128], index: 2, kind: output, shape index: {}]
  %s3 = sld [smem:[#allocation0]]
  $region14: #{_actor_loss_impl.1} parent=0
    _
  %s5 = ssub.s32 1, %s3
  %s6 = scalar_select 0, %s5, %s3
  %s8 = sshll.u32 %s0, 4
  %s9 = int_to_ptr.vmem [resolvable:$true] %s8
  %11 = dma.vmem_to_smem %s9, 16, [#allocation3], [#allocation2]
  %13 = dma.done [#allocation2], 16
  %14 = sfence
  // Predicated region
  $region2: #{_actor_loss_impl.1} parent=0 // pred_check
    _
  $region3: #{_actor_loss_impl.1} parent=0 // pred_check_branch
    %16 = sbr.rel (0) target = $region5
  $region4: #{_actor_loss_impl.1} parent=0 // pred_region
    _
  $region5: #{_actor_loss_impl.1} parent=0 // pred_fallthru
    _
  %v17 = vld [vmem:[%s1] sm:$0x1]
  %s18 = sld [smem:[#allocation3]]
  %s19 = sld [smem:[#allocation3 + $0x1]]
  %s20 = sld [smem:[#allocation3 + $0x2]]
  %s21 = sld [smem:[#allocation3 + $0x3]]
  %s22 = sld [smem:[#allocation3 + $0x4]]
  %s23 = sld [smem:[#allocation3 + $0x5]]
  %s24 = ssub.f32 %s18, %s19
  %v25 = vstv %s24
  %v26 = vmul.f32 %v17, %v25
  %v27 = vmin.f32 %v26, 80.0
  %v28 = vmul.f32 %v27, 1.442695
  %v29 = vpow.pop %v28
  %v30 = vadd.f32 %v29, 1.0
  %v31 = vrcp.pop %v30
  %v32 = vmul.f32 %v30, %v31
  %v33 = vsub.f32 1.0, %v32
  %v34 = vmul.f32 %v31, %v33
  %v35 = vadd.f32 %v31, %v34
  %vm36 = vweird.f32 %v30
  %vm37 = vweird.f32 %v31
  %vm38 = vmor %vm36, %vm37
  %v39 = vsel %vm38, %v31, %v35
  %v40 = vand.u32 2147483647, %v30
  %vm41 = vcmp.eq.f32.partialorder %v40, 8.507059e+37
  %v42 = vand.u32 %v30, 2147483648
  %v43 = vor.u32 1.1754944e-38, %v42
  %v44 = vsel %vm41, %v43, %v39
  %v45 = vsub.f32 1.0, %v44
  %v46 = vstv %s20
  %v47 = vmul.f32 %v45, %v46
  %v48 = vstv %s21
  %v49 = vmul.f32 %v44, %v48
  %v50 = vadd.f32 %v47, %v49
  %v51 = vstv %s22
  %v52 = vadd.f32 %v50, %v51
  %v53 = vmul.f32 %v52, %v45
  %v54 = vstv %s23
  %v55 = vadd.f32 %v50, %v54
  %v56 = vmul.f32 %v55, %v44
  %v57 = vadd.f32 %v53, %v56
  %58 = vst [vmem:[%s2] sm:$0x1] %v57
  // Predicated region
  $region6: #{_actor_loss_impl.1} parent=0 // pred_check
    _
  $region7: #{_actor_loss_impl.1} parent=0 // pred_check_branch
    %60 = sbr.rel (0) target = $region9
  $region8: #{_actor_loss_impl.1} parent=0 // pred_region
    _
  $region9: #{_actor_loss_impl.1} parent=0 // pred_fallthru
    _
  // Predicated region
  $region10: #{_actor_loss_impl.1} parent=0 // pred_check
    _
  $region11: #{_actor_loss_impl.1} parent=0 // pred_check_branch
    %62 = sbr.rel (0) target = $region13
  $region12: #{_actor_loss_impl.1} parent=0 // pred_region
    _
  $region13: #{_actor_loss_impl.1} parent=0 // pred_fallthru
    _

</llo_original>
